<compile_context>
chip_gen: v6e
topology: v6e:2x2x1
jax: 0.10.0
libtpu: 0.0.40
codegen_flags: <defaults>
</compile_context>

<pallas_src>
import functools

import jax
import jax.numpy as jnp
from jax import lax
from jax.experimental import pallas as pl
from jax.experimental.pallas import tpu as pltpu

# Constants standing in for the repo-level `settings` object.
KL_WEIGHT = 1.0
ENTROPY_WEIGHT = 0.1
GUMBEL_TAU = 1.0
EPSILON = 1e-7


def _vq_kernel(latents_ref, protos_ref, protos2_bf16_ref, p_sq_ref, gumbel_ref,
               quant_ref, probs_part_ref, logp_part_ref, sqerr_part_ref):
    """One batch tile: distances -> gumbel-softmax -> quantize -> partial loss sums."""
    x = latents_ref[...]                         # (bb, D) f32
    bb, D = x.shape
    K = p_sq_ref.shape[-1]

    # ---- distances on the MXU:  -||x-p||^2 = 2*x.p - ||p||^2 (+ ||x||^2, per-row
    #      constant, dropped -- cancels in softmax / log_softmax / argmax).
    #      (2*p) was pre-cast to bf16 in the wrapper (x2 is an exact exponent shift).
    xp2 = lax.dot_general(
        x.astype(jnp.bfloat16), protos2_bf16_ref[...],
        dimension_numbers=(((1,), (1,)), ((), ())),
        preferred_element_type=jnp.float32)      # (bb, K) == 2*x.p
    neg_dists = xp2 - p_sq_ref[...]              # (bb, K), broadcast (1, K)

    # ---- gumbel-softmax (hard=True, return_dist=True); noise streamed in from the wrapper.
    logits = (neg_dists + gumbel_ref[...]) * (1.0 / GUMBEL_TAU)
    row_max = jnp.max(logits, axis=-1, keepdims=True)
    shifted = logits - row_max
    ex = jnp.exp(shifted)
    denom = jnp.sum(ex, axis=-1, keepdims=True)
    logprobs = shifted - jnp.log(denom)          # log_softmax
    probs = ex / denom                           # softmax (reuses ex / denom)

    # hard one-hot of the first argmax (torch.max tie-breaking) on the SAME logits tensor.
    iota = lax.broadcasted_iota(jnp.int32, (bb, K), 1)
    is_max = logits == row_max
    first_idx = jnp.min(jnp.where(is_max, iota, K), axis=-1, keepdims=True)   # (bb, 1)
    onehot = (iota == first_idx).astype(jnp.float32)                          # (bb, K)

    # ---- quantized latents = onehot @ prototypes (exact f32 prototype rows).
    # TODO(synk): for production-sized K*D, switch to a bf16 two-term split of the
    # prototypes (or a gather) to avoid multi-pass f32 MXU emulation.
    quant = jnp.dot(onehot, protos_ref[...], preferred_element_type=jnp.float32)  # (bb, D)
    quant_ref[...] = quant

    # ---- per-tile partial sums (reduced + finalized in the JAX wrapper).
    probs_part_ref[...] = jnp.sum(probs, axis=0, keepdims=True)[None]         # (1,1,K)
    logp_part_ref[...] = jnp.sum(logprobs, axis=0, keepdims=True)[None]       # (1,1,K)
    sq_row = jnp.sum((quant - x) ** 2, axis=1, keepdims=True)                 # (bb,1)
    sqerr_part_ref[...] = jnp.sum(sq_row, axis=0, keepdims=True)[None]        # (1,1,1)


def _vmem_budget_bytes():
    """Generation-aware VMEM limit: ~96 MiB on v5e/v6e, ~48 MiB on v7x, else conservative."""
    try:
        cap = int(pltpu.get_tpu_info().vmem_capacity_bytes)
    except Exception:
        cap = 64 * 1024 * 1024   # conservative fallback (v7x per-TensorCore VMEM)
    return int(min(cap * 3 // 4, 100 * 1024 * 1024))


def _pick_block_b(B, D, K, vmem_budget_bytes):
    """Largest batch tile (multiple of 8, divides B) that fits the VMEM budget."""
    # Per-row bytes: double-buffered latents + quant + noise DMA tiles, plus roughly
    # ten (row, K) and four (row, D) f32 temporaries for softmax/onehot/MSE.
    per_row = 4 * (2 * D + 2 * D + 2 * K + 10 * K + 4 * D)
    # Resident prototype-derived inputs (f32 + bf16 protos, p_sq), double-buffered.
    fixed = 2 * (4 * K * D) + 2 * (2 * K * D) + 2 * (4 * K)
    cap = max((vmem_budget_bytes - fixed) // per_row, 8)
    cap = min(cap, 8192)
    if B <= cap:
        return B
    bb = (cap // 8) * 8
    while bb >= 8 and B % bb != 0:
        bb -= 8
    if bb < 8 or B % bb != 0:
        # TODO(synk): pad ragged batches instead of requiring a multiple-of-8 divisor.
        raise ValueError("batch size must have a multiple-of-8 divisor <= the VMEM cap")
    return bb


@functools.partial(jax.jit, static_argnames=("block_b", "vmem_limit_bytes"))
def _vq_forward(latents, prototypes, key, *, block_b, vmem_limit_bytes):
    B, D = latents.shape
    K = prototypes.shape[0]
    num_tiles = B // block_b

    # Hoisted prototype prep (grid-invariant): exact x2 fold into the bf16 cast, and ||p||^2.
    protos2_bf16 = (2.0 * prototypes).astype(jnp.bfloat16)                    # (K, D)
    p_sq = jnp.sum(prototypes * prototypes, axis=1)[None, :]                  # (1, K)
    # Gumbel(0,1) noise generated outside the kernel (in-kernel HW PRNG is not
    # available in interpret mode); one extra (B, K) f32 input stream.
    gumbel = jax.random.gumbel(key, (B, K), dtype=jnp.float32)

    # TODO(synk): for large codebooks on v7x, pass the prototype inputs with
    # pipeline_mode=pl.Buffered(1) (constant index_map) to reclaim the second buffer.
    quant, probs_part, logp_part, sqerr_part = pl.pallas_call(
        _vq_kernel,
        grid=(num_tiles,),
        in_specs=[
            pl.BlockSpec((block_b, D), lambda i: (i, 0)),     # latents tile
            pl.BlockSpec((K, D), lambda i: (0, 0)),           # prototypes (f32, resident)
            pl.BlockSpec((K, D), lambda i: (0, 0)),           # 2*prototypes (bf16, resident)
            pl.BlockSpec((1, K), lambda i: (0, 0)),           # ||p||^2 (resident)
            pl.BlockSpec((block_b, K), lambda i: (i, 0)),     # gumbel noise tile
        ],
        out_specs=(
            pl.BlockSpec((block_b, D), lambda i: (i, 0)),     # quantized tile
            pl.BlockSpec((1, 1, K), lambda i: (i, 0, 0)),     # per-tile sum_b probs
            pl.BlockSpec((1, 1, K), lambda i: (i, 0, 0)),     # per-tile sum_b logprobs
            pl.BlockSpec((1, 1, 1), lambda i: (i, 0, 0)),     # per-tile sum of sq. errors
        ),
        out_shape=(
            jax.ShapeDtypeStruct((B, D), jnp.float32),
            jax.ShapeDtypeStruct((num_tiles, 1, K), jnp.float32),
            jax.ShapeDtypeStruct((num_tiles, 1, K), jnp.float32),
            jax.ShapeDtypeStruct((num_tiles, 1, 1), jnp.float32),
        ),
        compiler_params=pltpu.CompilerParams(
            # No cross-step state -> batch axis is truly parallel (uses both TCs on v7x).
            dimension_semantics=("parallel",),
            vmem_limit_bytes=vmem_limit_bytes,
        ),
    )(latents, prototypes, protos2_bf16, p_sq, gumbel)

    # ---- O(K) finalize in the wrapper (prior / KL / entropy / MSE) ----
    inv_b = 1.0 / jnp.float32(B)
    probs_sum = jnp.sum(probs_part, axis=0)[0]                # (K,)  sum_b probs
    logp_sum = jnp.sum(logp_part, axis=0)[0]                  # (K,)  sum_b logprobs
    sq_total = jnp.sum(sqerr_part)                            # scalar

    # true_prior = mean_b(probs + eps), normalized over K
    pbar = probs_sum * inv_b + EPSILON
    pbar = pbar / jnp.sum(pbar)
    log_pbar = jnp.log(pbar)
    plogp = jnp.sum(pbar * log_pbar)
    # KLDivLoss(logprobs, prior), reduction='batchmean':
    #   sum_k pbar*log(pbar) - sum_k pbar * mean_b(logprobs[:, k])
    complexity = plogp - jnp.sum(pbar * (logp_sum * inv_b))
    ent = -plogp

    mse = sq_total * (inv_b / jnp.float32(D))
    # embedding_loss == commitment_loss in the forward value (detach only changes gradients).
    # TODO(synk): split them properly if a custom VJP is added.
    embedding_loss = mse
    commitment_loss = mse

    total = (KL_WEIGHT * complexity + ENTROPY_WEIGHT * ent
             + embedding_loss + 0.25 * commitment_loss)
    return quant, total


def vq_layer_forward(latents, prototypes, key, *, block_b=None):
    """latents: (B, D) f32, prototypes: (K, D) f32, key: jax PRNG key for Gumbel noise."""
    B, D = latents.shape
    K, D2 = prototypes.shape
    if D != D2:
        raise ValueError("latent_dim mismatch between latents and prototypes")

    vmem_limit = _vmem_budget_bytes()
    if block_b is None:
        block_b = _pick_block_b(B, D, K, vmem_limit)
    if B % block_b != 0:
        raise ValueError("batch must be divisible by block_b")
    if block_b != B and block_b % 8 != 0:
        raise ValueError("block_b must be a multiple of 8 (sublane tiling)")

    return _vq_forward(latents, prototypes, key,
                       block_b=block_b, vmem_limit_bytes=vmem_limit)


if __name__ == "__main__":
    key = jax.random.PRNGKey(0)
    k_proto, k_lat, k_gumbel = jax.random.split(key, 3)

    num_protos = 16
    latent_dim = 32
    batch = 16          # two grid steps of block_b=8 to exercise the per-tile partials

    # Deterministic init: prototypes ~ U(-1, 1), matching nn.Parameter.uniform_(-1, 1).
    prototypes = jax.random.uniform(
        k_proto, (num_protos, latent_dim), minval=-1.0, maxval=1.0, dtype=jnp.float32
    )
    latents = jax.random.normal(k_lat, (batch, latent_dim), dtype=jnp.float32)

    quantized, total_loss = vq_layer_forward(latents, prototypes, k_gumbel, block_b=8)
    jax.block_until_ready((quantized, total_loss))

    assert quantized.shape == (batch, latent_dim)
    assert total_loss.shape == ()
    assert bool(jnp.isfinite(total_loss))
    # Each quantized row must be (numerically) one of the prototype rows.
    d2 = jnp.sum((quantized[:, None, :] - prototypes[None, :, :]) ** 2, axis=-1)
    assert bool(jnp.all(jnp.min(d2, axis=-1) < 1e-6))
    print("KERNEL_OK")
</pallas_src>

<mosaic_0001>
module attributes {stable_mosaic.version = 11 : i64} {
  func.func @_vq_kernel(%arg0: i32, %arg1: memref<8x32xf32, #tpu.memory_space<vmem>>, %arg2: memref<16x32xf32, #tpu.memory_space<vmem>>, %arg3: memref<16x32xbf16, #tpu.memory_space<vmem>>, %arg4: memref<1x16xf32, #tpu.memory_space<vmem>>, %arg5: memref<8x16xf32, #tpu.memory_space<vmem>>, %arg6: memref<8x32xf32, #tpu.memory_space<vmem>>, %arg7: memref<1x1x16xf32, #tpu.memory_space<vmem>>, %arg8: memref<1x1x16xf32, #tpu.memory_space<vmem>>, %arg9: memref<1x1x1xf32, #tpu.memory_space<vmem>>) attributes {dimension_semantics = [#tpu.dimension_semantics<parallel>], iteration_bounds = array<i64: 2>, scalar_prefetch = 0 : i64, scratch_operands = 0 : i64, tpu.core_type = #tpu.core_type<tc>, window_params = [{transform_indices = @transform_0, window_bounds = array<i64: 8, 32>}, {pipeline_mode = #tpu.pipeline_mode<synchronous>, transform_indices = @transform_1, window_bounds = array<i64: 16, 32>}, {pipeline_mode = #tpu.pipeline_mode<synchronous>, transform_indices = @transform_2, window_bounds = array<i64: 16, 32>}, {pipeline_mode = #tpu.pipeline_mode<synchronous>, transform_indices = @transform_3, window_bounds = array<i64: 1, 16>}, {transform_indices = @transform_4, window_bounds = array<i64: 8, 16>}, {transform_indices = @transform_5, window_bounds = array<i64: 8, 32>}, {transform_indices = @transform_6, window_bounds = array<i64: 1, 1, 16>}, {transform_indices = @transform_7, window_bounds = array<i64: 1, 1, 16>}, {transform_indices = @transform_8, window_bounds = array<i64: 1, 1, 1>}]} {
    %c0 = arith.constant 0 : index
    %c0_0 = arith.constant 0 : index
    %0 = vector.load %arg1[%c0, %c0_0] : memref<8x32xf32, #tpu.memory_space<vmem>>, vector<8x32xf32>
    %1 = arith.truncf %0 : vector<8x32xf32> to vector<8x32xbf16>
    %c0_1 = arith.constant 0 : index
    %c0_2 = arith.constant 0 : index
    %2 = vector.load %arg3[%c0_1, %c0_2] : memref<16x32xbf16, #tpu.memory_space<vmem>>, vector<16x32xbf16>
    %cst = arith.constant dense<0.000000e+00> : vector<8x16xf32>
    %3 = tpu.matmul %1, %2, %cst {dimension_numbers = #tpu.dot_dimension_numbers<[1], [1], [0], [0], [0, 0, 1, 0], [], []>} : vector<8x32xbf16>, vector<16x32xbf16>, vector<8x16xf32> -> vector<8x16xf32>
    %c0_3 = arith.constant 0 : index
    %c0_4 = arith.constant 0 : index
    %4 = vector.load %arg4[%c0_3, %c0_4] : memref<1x16xf32, #tpu.memory_space<vmem>>, vector<1x16xf32>
    %5 = vector.broadcast %4 : vector<1x16xf32> to vector<8x16xf32>
    %6 = arith.subf %3, %5 : vector<8x16xf32>
    %c0_5 = arith.constant 0 : index
    %c0_6 = arith.constant 0 : index
    %7 = vector.load %arg5[%c0_5, %c0_6] : memref<8x16xf32, #tpu.memory_space<vmem>>, vector<8x16xf32>
    %8 = arith.addf %6, %7 : vector<8x16xf32>
    %cst_7 = arith.constant 1.000000e+00 : f32
    %9 = vector.broadcast %cst_7 : f32 to vector<8x16xf32>
    %10 = arith.mulf %8, %9 : vector<8x16xf32>
    %cst_8 = arith.constant dense<0xFF800000> : vector<8xf32>
    %11 = vector.multi_reduction <maximumf>, %10, %cst_8 [1] : vector<8x16xf32> to vector<8xf32>
    %12 = vector.shape_cast %11 : vector<8xf32> to vector<8x1xf32>
    %13 = vector.broadcast %12 : vector<8x1xf32> to vector<8x16xf32>
    %14 = arith.subf %10, %13 : vector<8x16xf32>
    %15 = math.exp %14 : vector<8x16xf32>
    %cst_9 = arith.constant dense<0.000000e+00> : vector<8xf32>
    %16 = vector.multi_reduction <add>, %15, %cst_9 [1] : vector<8x16xf32> to vector<8xf32>
    %17 = vector.shape_cast %16 : vector<8xf32> to vector<8x1xf32>
    %18 = math.log %17 : vector<8x1xf32>
    %19 = vector.broadcast %18 : vector<8x1xf32> to vector<8x16xf32>
    %20 = arith.subf %14, %19 : vector<8x16xf32>
    %21 = vector.broadcast %17 : vector<8x1xf32> to vector<8x16xf32>
    %22 = arith.divf %15, %21 : vector<8x16xf32>
    %23 = tpu.iota {dimensions = array<i32: 1>} : vector<8x16xi32>
    %24 = vector.broadcast %12 : vector<8x1xf32> to vector<8x16xf32>
    %25 = arith.cmpf oeq, %10, %24 : vector<8x16xf32>
    %c16_i32 = arith.constant 16 : i32
    %26 = vector.broadcast %c16_i32 : i32 to vector<8x16xi32>
    %27 = arith.select %25, %23, %26 : vector<8x16xi1>, vector<8x16xi32>
    %cst_10 = arith.constant dense<2147483647> : vector<8xi32>
    %28 = vector.multi_reduction <minsi>, %27, %cst_10 [1] : vector<8x16xi32> to vector<8xi32>
    %29 = vector.shape_cast %28 : vector<8xi32> to vector<8x1xi32>
    %30 = vector.broadcast %29 : vector<8x1xi32> to vector<8x16xi32>
    %31 = arith.cmpi eq, %23, %30 : vector<8x16xi32>
    %32 = arith.extui %31 : vector<8x16xi1> to vector<8x16xi32>
    %33 = arith.sitofp %32 : vector<8x16xi32> to vector<8x16xf32>
    %c0_11 = arith.constant 0 : index
    %c0_12 = arith.constant 0 : index
    %34 = vector.load %arg2[%c0_11, %c0_12] : memref<16x32xf32, #tpu.memory_space<vmem>>, vector<16x32xf32>
    %cst_13 = arith.constant dense<0.000000e+00> : vector<8x32xf32>
    %35 = tpu.matmul %33, %34, %cst_13 {dimension_numbers = #tpu.dot_dimension_numbers<[1], [0], [0], [1], [0, 0, 1, 1], [], []>} : vector<8x16xf32>, vector<16x32xf32>, vector<8x32xf32> -> vector<8x32xf32>
    %c0_14 = arith.constant 0 : index
    %c0_15 = arith.constant 0 : index
    %36 = vector.load %arg6[%c0_14, %c0_15] : memref<8x32xf32, #tpu.memory_space<vmem>>, vector<8x32xf32>
    tpu.vector_store %arg6[%c0_14, %c0_15], %35 {strides = array<i32>} : memref<8x32xf32, #tpu.memory_space<vmem>>, vector<8x32xf32>,
    %cst_16 = arith.constant dense<0.000000e+00> : vector<16xf32>
    %37 = vector.multi_reduction <add>, %22, %cst_16 [0] : vector<8x16xf32> to vector<16xf32>
    %38 = vector.shape_cast %37 : vector<16xf32> to vector<1x16xf32>
    %39 = vector.shape_cast %38 : vector<1x16xf32> to vector<1x1x16xf32>
    %c0_17 = arith.constant 0 : index
    %c0_18 = arith.constant 0 : index
    %c0_19 = arith.constant 0 : index
    %40 = vector.load %arg7[%c0_17, %c0_18, %c0_19] : memref<1x1x16xf32, #tpu.memory_space<vmem>>, vector<1x1x16xf32>
    tpu.vector_store %arg7[%c0_17, %c0_18, %c0_19], %39 {strides = array<i32>} : memref<1x1x16xf32, #tpu.memory_space<vmem>>, vector<1x1x16xf32>,
    %cst_20 = arith.constant dense<0.000000e+00> : vector<16xf32>
    %41 = vector.multi_reduction <add>, %20, %cst_20 [0] : vector<8x16xf32> to vector<16xf32>
    %42 = vector.shape_cast %41 : vector<16xf32> to vector<1x16xf32>
    %43 = vector.shape_cast %42 : vector<1x16xf32> to vector<1x1x16xf32>
    %c0_21 = arith.constant 0 : index
    %c0_22 = arith.constant 0 : index
    %c0_23 = arith.constant 0 : index
    %44 = vector.load %arg8[%c0_21, %c0_22, %c0_23] : memref<1x1x16xf32, #tpu.memory_space<vmem>>, vector<1x1x16xf32>
    tpu.vector_store %arg8[%c0_21, %c0_22, %c0_23], %43 {strides = array<i32>} : memref<1x1x16xf32, #tpu.memory_space<vmem>>, vector<1x1x16xf32>,
    %45 = arith.subf %35, %0 : vector<8x32xf32>
    %46 = arith.mulf %45, %45 : vector<8x32xf32>
    %cst_24 = arith.constant dense<0.000000e+00> : vector<8xf32>
    %47 = vector.multi_reduction <add>, %46, %cst_24 [1] : vector<8x32xf32> to vector<8xf32>
    %48 = vector.shape_cast %47 : vector<8xf32> to vector<8x1xf32>
    %cst_25 = arith.constant dense<0.000000e+00> : vector<1xf32>
    %49 = vector.multi_reduction <add>, %48, %cst_25 [0] : vector<8x1xf32> to vector<1xf32>
    %50 = vector.shape_cast %49 : vector<1xf32> to vector<1x1xf32>
    %51 = vector.shape_cast %50 : vector<1x1xf32> to vector<1x1x1xf32>
    %c0_26 = arith.constant 0 : index
    %c0_27 = arith.constant 0 : index
    %c0_28 = arith.constant 0 : index
    %52 = vector.load %arg9[%c0_26, %c0_27, %c0_28] : memref<1x1x1xf32, #tpu.memory_space<vmem>>, vector<1x1x1xf32>
    tpu.vector_store %arg9[%c0_26, %c0_27, %c0_28], %51 {strides = array<i32>} : memref<1x1x1xf32, #tpu.memory_space<vmem>>, vector<1x1x1xf32>,
    return
  }
  func.func @transform_0(%arg0: i32) -> (i32, i32) {
    %c0_i32 = arith.constant 0 : i32
    %c0_i32_0 = arith.constant 0 : i32
    return %arg0, %c0_i32 : i32, i32
  }
  func.func @transform_1(%arg0: i32) -> (i32, i32) {
    %c0_i32 = arith.constant 0 : i32
    %c0_i32_0 = arith.constant 0 : i32
    %c0_i32_1 = arith.constant 0 : i32
    return %c0_i32, %c0_i32_0 : i32, i32
  }
  func.func @transform_2(%arg0: i32) -> (i32, i32) {
    %c0_i32 = arith.constant 0 : i32
    %c0_i32_0 = arith.constant 0 : i32
    %c0_i32_1 = arith.constant 0 : i32
    return %c0_i32, %c0_i32_0 : i32, i32
  }
  func.func @transform_3(%arg0: i32) -> (i32, i32) {
    %c0_i32 = arith.constant 0 : i32
    %c0_i32_0 = arith.constant 0 : i32
    %c0_i32_1 = arith.constant 0 : i32
    return %c0_i32, %c0_i32_0 : i32, i32
  }
  func.func @transform_4(%arg0: i32) -> (i32, i32) {
    %c0_i32 = arith.constant 0 : i32
    %c0_i32_0 = arith.constant 0 : i32
    return %arg0, %c0_i32 : i32, i32
  }
  func.func @transform_5(%arg0: i32) -> (i32, i32) {
    %c0_i32 = arith.constant 0 : i32
    %c0_i32_0 = arith.constant 0 : i32
    return %arg0, %c0_i32 : i32, i32
  }
  func.func @transform_6(%arg0: i32) -> (i32, i32, i32) {
    %c0_i32 = arith.constant 0 : i32
    %c0_i32_0 = arith.constant 0 : i32
    %c0_i32_1 = arith.constant 0 : i32
    return %arg0, %c0_i32, %c0_i32_0 : i32, i32, i32
  }
  func.func @transform_7(%arg0: i32) -> (i32, i32, i32) {
    %c0_i32 = arith.constant 0 : i32
    %c0_i32_0 = arith.constant 0 : i32
    %c0_i32_1 = arith.constant 0 : i32
    return %arg0, %c0_i32, %c0_i32_0 : i32, i32, i32
  }
  func.func @transform_8(%arg0: i32) -> (i32, i32, i32) {
    %c0_i32 = arith.constant 0 : i32
    %c0_i32_0 = arith.constant 0 : i32
    %c0_i32_1 = arith.constant 0 : i32
    return %arg0, %c0_i32, %c0_i32_0 : i32, i32, i32
  }
}

</mosaic_0001>

<llo_original>
// kernel: _vq_forward.1
$region0: #{_vq_forward.1}
  #allocation0 [shape = 'u32[]', space=smem, size = 0x4, offset = 0x4, fixed_abs, tag = 'smem constant byte address 0x4 - core index']
  #allocation1 [shape = 'u32[144,128]{1,0:T(1,128)}', space=vmem, size = 0x12000, scoped, tag = 'internal scratch']
  %s0 = inlined_call_operand.vmem [shape: f32[16,32], index: 0, kind: input, shape index: {}]
  %s1 = inlined_call_operand.vmem [shape: f32[16,32], index: 1, kind: input, shape index: {}]
  %s2 = inlined_call_operand.vmem [shape: bf16[16,32], index: 2, kind: input, shape index: {}]
  %s3 = inlined_call_operand.vmem [shape: f32[1,16], index: 3, kind: input, shape index: {}]
  %s4 = inlined_call_operand.vmem [shape: f32[16,16], index: 4, kind: input, shape index: {}]
  %s5 = inlined_call_operand.hbm [shape: f32[16,32], index: 5, kind: output, shape index: {0}]
  %s6 = inlined_call_operand.vmem [shape: f32[2,1,16], index: 6, kind: output, shape index: {1}]
  %s7 = inlined_call_operand.vmem [shape: f32[2,1,16], index: 7, kind: output, shape index: {2}]
  %s8 = inlined_call_operand.vmem [shape: f32[2,1,1], index: 8, kind: output, shape index: {3}]
  %9 = xla_tuple %s5, %s6, %s7, %s8
  %s10 = sld [smem:[#allocation0]]
  $region77: #{_vq_forward.1} parent=0
    _
  %s12 = ssub.s32 1, %s10
  %s13 = scalar_select 0, %s12, %s10
  $region1: #{_vq_forward.1} parent=0
    #allocation2 [shape = 'u8[8192]{0}', space=vmem, size = 0x2000, scoped, tag = 'output window, operand 0']
    #allocation3 [shape = 's32[2]{0}', space=sflag, size = 0x8, scoped, tag = 'scoped memory for _vq_forward.1']
    %14 = vsyncpa [#allocation3], 0
    %s15 = scalar_lea.sflag [#allocation3], 1
    %16 = vsyncpa %s15, 0
    loop: start=0, step=1, limit=4
    $region2: #{_vq_forward.1} parent=1 // loop_pre_header
      _
    $region3: #{_vq_forward.1} parent=1 // loop_header
      %s18 = sphi 0, %s22
      %p19 = scmp.ge.s32.totalorder %s18, 4
      %s28 = sphi 0, %s30
      %s31 = sphi 0, %s28
      %s32 = sphi 0, %s31
      %s48 = sphi 0, %s32
      %s52 = sphi 0, %s52
      %s54 = sphi 0, %s52
      %s55 = sphi 0, %s54
      %s69 = sphi 0, %s55
      %s73 = sphi 0, %s73
      %s75 = sphi 0, %s73
      %s76 = sphi 0, %s75
      %s90 = sphi 0, %s76
      %s94 = sphi 0, %s94
      %s96 = sphi 0, %s94
      %s97 = sphi 0, %s96
      %s111 = sphi 0, %s97
      %s117 = sphi 0, %s119
      %s120 = sphi 0, %s117
      %s121 = sphi 0, %s120
      %s137 = sphi 0, %s121
      %s143 = sphi 0, %s145
      %s146 = sphi 0, %s143
      %s147 = sphi 0, %s146
      %s163 = sphi 0, %s147
      %s169 = sphi 0, %s171
      %s172 = sphi 0, %s169
      %s173 = sphi 0, %s172
      %s189 = sphi 0, %s173
      %s195 = sphi 0, %s197
      %s198 = sphi 0, %s195
      %s199 = sphi 0, %s198
      %s215 = sphi 0, %s199
      %s221 = sphi 0, %s223
      %s224 = sphi 0, %s221
      %s225 = sphi 0, %s224
      %s241 = sphi 0, %s225
    $region4: #{_vq_forward.1} parent=1 // loop_header_branch
      %21 = sbr.rel (%p19) target = $region8
    $region5: #{_vq_forward.1} parent=1 // loop_body
      %s23 = ssub.s32 %s18, 1
      %s24 = ssub.s32 %s18, 2
      %s25 = sadd.s32 %s18, 1
      %s26 = ssub.s32 %s18, %s25
      %p27 = scmp.eq.s32.totalorder %s26, 0
      %s29 = sadd.s32 %s28, 1
      %s30 = scalar_select %p27, %s28, %s29
      %p33 = pneg %p27
      %p34 = scmp.eq.s32.totalorder %s18, 1
      %p35 = por %p33, %p34
      %p36 = scmp.ne.s32.totalorder %s28, %s31
      %p37 = scmp.eq.s32.totalorder %s18, 0
      %p38 = por %p36, %p37
      %p39 = scmp.ne.s32.totalorder %s28, %s31
      %p40 = scmp.eq.s32.totalorder %s23, 1
      %p41 = por %p39, %p40
      %p42 = scmp.ne.s32.totalorder %s31, %s32
      %p43 = scmp.eq.s32.totalorder %s23, 0
      %p44 = por %p42, %p43
      %p45 = scmp.ne.s32.totalorder %s31, %s32
      %p46 = scmp.eq.s32.totalorder %s24, 1
      %p47 = por %p45, %p46
      %p49 = scmp.ne.s32.totalorder %s32, %s48
      %p50 = scmp.eq.s32.totalorder %s24, 0
      %p51 = por %p49, %p50
      %s53 = sadd.s32 %s52, 1
      %p56 = scmp.eq.s32.totalorder %s18, 1
      %p57 = scmp.ne.s32.totalorder %s52, %s54
      %p58 = scmp.eq.s32.totalorder %s18, 0
      %p59 = por %p57, %p58
      %p60 = scmp.ne.s32.totalorder %s52, %s54
      %p61 = scmp.eq.s32.totalorder %s23, 1
      %p62 = por %p60, %p61
      %p63 = scmp.ne.s32.totalorder %s54, %s55
      %p64 = scmp.eq.s32.totalorder %s23, 0
      %p65 = por %p63, %p64
      %p66 = scmp.ne.s32.totalorder %s54, %s55
      %p67 = scmp.eq.s32.totalorder %s24, 1
      %p68 = por %p66, %p67
      %p70 = scmp.ne.s32.totalorder %s55, %s69
      %p71 = scmp.eq.s32.totalorder %s24, 0
      %p72 = por %p70, %p71
      %s74 = sadd.s32 %s73, 1
      %p77 = scmp.eq.s32.totalorder %s18, 1
      %p78 = scmp.ne.s32.totalorder %s73, %s75
      %p79 = scmp.eq.s32.totalorder %s18, 0
      %p80 = por %p78, %p79
      %p81 = scmp.ne.s32.totalorder %s73, %s75
      %p82 = scmp.eq.s32.totalorder %s23, 1
      %p83 = por %p81, %p82
      %p84 = scmp.ne.s32.totalorder %s75, %s76
      %p85 = scmp.eq.s32.totalorder %s23, 0
      %p86 = por %p84, %p85
      %p87 = scmp.ne.s32.totalorder %s75, %s76
      %p88 = scmp.eq.s32.totalorder %s24, 1
      %p89 = por %p87, %p88
      %p91 = scmp.ne.s32.totalorder %s76, %s90
      %p92 = scmp.eq.s32.totalorder %s24, 0
      %p93 = por %p91, %p92
      %s95 = sadd.s32 %s94, 1
      %p98 = scmp.eq.s32.totalorder %s18, 1
      %p99 = scmp.ne.s32.totalorder %s94, %s96
      %p100 = scmp.eq.s32.totalorder %s18, 0
      %p101 = por %p99, %p100
      %p102 = scmp.ne.s32.totalorder %s94, %s96
      %p103 = scmp.eq.s32.totalorder %s23, 1
      %p104 = por %p102, %p103
      %p105 = scmp.ne.s32.totalorder %s96, %s97
      %p106 = scmp.eq.s32.totalorder %s23, 0
      %p107 = por %p105, %p106
      %p108 = scmp.ne.s32.totalorder %s96, %s97
      %p109 = scmp.eq.s32.totalorder %s24, 1
      %p110 = por %p108, %p109
      %p112 = scmp.ne.s32.totalorder %s97, %s111
      %p113 = scmp.eq.s32.totalorder %s24, 0
      %p114 = por %p112, %p113
      %s115 = ssub.s32 %s18, %s25
      %p116 = scmp.eq.s32.totalorder %s115, 0
      %s118 = sadd.s32 %s117, 1
      %s119 = scalar_select %p116, %s117, %s118
      %p122 = pneg %p116
      %p123 = scmp.eq.s32.totalorder %s18, 1
      %p124 = por %p122, %p123
      %p125 = scmp.ne.s32.totalorder %s117, %s120
      %p126 = scmp.eq.s32.totalorder %s18, 0
      %p127 = por %p125, %p126
      %p128 = scmp.ne.s32.totalorder %s117, %s120
      %p129 = scmp.eq.s32.totalorder %s23, 1
      %p130 = por %p128, %p129
      %p131 = scmp.ne.s32.totalorder %s120, %s121
      %p132 = scmp.eq.s32.totalorder %s23, 0
      %p133 = por %p131, %p132
      %p134 = scmp.ne.s32.totalorder %s120, %s121
      %p135 = scmp.eq.s32.totalorder %s24, 1
      %p136 = por %p134, %p135
      %p138 = scmp.ne.s32.totalorder %s121, %s137
      %p139 = scmp.eq.s32.totalorder %s24, 0
      %p140 = por %p138, %p139
      %s141 = ssub.s32 %s18, %s25
      %p142 = scmp.eq.s32.totalorder %s141, 0
      %s144 = sadd.s32 %s143, 1
      %s145 = scalar_select %p142, %s143, %s144
      %p148 = pneg %p142
      %p149 = scmp.eq.s32.totalorder %s18, 1
      %p150 = por %p148, %p149
      %p151 = scmp.ne.s32.totalorder %s143, %s146
      %p152 = scmp.eq.s32.totalorder %s18, 0
      %p153 = por %p151, %p152
      %p154 = scmp.ne.s32.totalorder %s143, %s146
      %p155 = scmp.eq.s32.totalorder %s23, 1
      %p156 = por %p154, %p155
      %p157 = scmp.ne.s32.totalorder %s146, %s147
      %p158 = scmp.eq.s32.totalorder %s23, 0
      %p159 = por %p157, %p158
      %p160 = scmp.ne.s32.totalorder %s146, %s147
      %p161 = scmp.eq.s32.totalorder %s24, 1
      %p162 = por %p160, %p161
      %p164 = scmp.ne.s32.totalorder %s147, %s163
      %p165 = scmp.eq.s32.totalorder %s24, 0
      %p166 = por %p164, %p165
      %s167 = ssub.s32 %s18, %s25
      %p168 = scmp.eq.s32.totalorder %s167, 0
      %s170 = sadd.s32 %s169, 1
      %s171 = scalar_select %p168, %s169, %s170
      %p174 = pneg %p168
      %p175 = scmp.eq.s32.totalorder %s18, 1
      %p176 = por %p174, %p175
      %p177 = scmp.ne.s32.totalorder %s169, %s172
      %p178 = scmp.eq.s32.totalorder %s18, 0
      %p179 = por %p177, %p178
      %p180 = scmp.ne.s32.totalorder %s169, %s172
      %p181 = scmp.eq.s32.totalorder %s23, 1
      %p182 = por %p180, %p181
      %p183 = scmp.ne.s32.totalorder %s172, %s173
      %p184 = scmp.eq.s32.totalorder %s23, 0
      %p185 = por %p183, %p184
      %p186 = scmp.ne.s32.totalorder %s172, %s173
      %p187 = scmp.eq.s32.totalorder %s24, 1
      %p188 = por %p186, %p187
      %p190 = scmp.ne.s32.totalorder %s173, %s189
      %p191 = scmp.eq.s32.totalorder %s24, 0
      %p192 = por %p190, %p191
      %s193 = ssub.s32 %s18, %s25
      %p194 = scmp.eq.s32.totalorder %s193, 0
      %s196 = sadd.s32 %s195, 1
      %s197 = scalar_select %p194, %s195, %s196
      %p200 = pneg %p194
      %p201 = scmp.eq.s32.totalorder %s18, 1
      %p202 = por %p200, %p201
      %p203 = scmp.ne.s32.totalorder %s195, %s198
      %p204 = scmp.eq.s32.totalorder %s18, 0
      %p205 = por %p203, %p204
      %p206 = scmp.ne.s32.totalorder %s195, %s198
      %p207 = scmp.eq.s32.totalorder %s23, 1
      %p208 = por %p206, %p207
      %p209 = scmp.ne.s32.totalorder %s198, %s199
      %p210 = scmp.eq.s32.totalorder %s23, 0
      %p211 = por %p209, %p210
      %p212 = scmp.ne.s32.totalorder %s198, %s199
      %p213 = scmp.eq.s32.totalorder %s24, 1
      %p214 = por %p212, %p213
      %p216 = scmp.ne.s32.totalorder %s199, %s215
      %p217 = scmp.eq.s32.totalorder %s24, 0
      %p218 = por %p216, %p217
      %s219 = ssub.s32 %s18, %s25
      %p220 = scmp.eq.s32.totalorder %s219, 0
      %s222 = sadd.s32 %s221, 1
      %s223 = scalar_select %p220, %s221, %s222
      %p226 = pneg %p220
      %p227 = scmp.eq.s32.totalorder %s18, 1
      %p228 = por %p226, %p227
      %p229 = scmp.ne.s32.totalorder %s221, %s224
      %p230 = scmp.eq.s32.totalorder %s18, 0
      %p231 = por %p229, %p230
      %p232 = scmp.ne.s32.totalorder %s221, %s224
      %p233 = scmp.eq.s32.totalorder %s23, 1
      %p234 = por %p232, %p233
      %p235 = scmp.ne.s32.totalorder %s224, %s225
      %p236 = scmp.eq.s32.totalorder %s23, 0
      %p237 = por %p235, %p236
      %p238 = scmp.ne.s32.totalorder %s224, %s225
      %p239 = scmp.eq.s32.totalorder %s24, 1
      %p240 = por %p238, %p239
      %p242 = scmp.ne.s32.totalorder %s225, %s241
      %p243 = scmp.eq.s32.totalorder %s24, 0
      %p244 = por %p242, %p243
      %p245 = scmp.le.s32.totalorder 1, %s18
      %p246 = scmp.lt.s32.totalorder %s18, 3
      %p247 = pnand %p245, %p246
      %p248 = pneg %p247
      // Predicated region
      $region9: #{_vq_forward.1} parent=5 // pred_check
        _
      $region10: #{_vq_forward.1} parent=5 // pred_check_branch
        %250 = sbr.rel (%p247) target = $region12
      $region11: #{_vq_forward.1} parent=5 // pred_region
        %s251 = ssub.s32 %s18, 1
        // Predicated region
        $region13: #{_vq_forward.1} parent=11 // pred_check
          %p252 = pneg %p65
        $region14: #{_vq_forward.1} parent=11 // pred_check_branch
          %254 = sbr.rel (%p252) target = $region16
        $region15: #{_vq_forward.1} parent=11 // pred_region
          _
        $region16: #{_vq_forward.1} parent=11 // pred_fallthru
          _
        // Predicated region
        $region17: #{_vq_forward.1} parent=11 // pred_check
          %p255 = pneg %p86
        $region18: #{_vq_forward.1} parent=11 // pred_check_branch
          %257 = sbr.rel (%p255) target = $region20
        $region19: #{_vq_forward.1} parent=11 // pred_region
          _
        $region20: #{_vq_forward.1} parent=11 // pred_fallthru
          _
        // Predicated region
        $region21: #{_vq_forward.1} parent=11 // pred_check
          %p258 = pneg %p107
        $region22: #{_vq_forward.1} parent=11 // pred_check_branch
          %260 = sbr.rel (%p258) target = $region24
        $region23: #{_vq_forward.1} parent=11 // pred_region
          _
        $region24: #{_vq_forward.1} parent=11 // pred_fallthru
          _
      $region12: #{_vq_forward.1} parent=5 // pred_fallthru
        _
      %p261 = scmp.lt.s32.totalorder %s18, 2
      // Predicated region
      $region25: #{_vq_forward.1} parent=5 // pred_check
        %p262 = pneg %p261
      $region26: #{_vq_forward.1} parent=5 // pred_check_branch
        %264 = sbr.rel (%p262) target = $region28
      $region27: #{_vq_forward.1} parent=5 // pred_region
        // Predicated region
        $region29: #{_vq_forward.1} parent=27 // pred_check
          %p265 = pneg %p38
        $region30: #{_vq_forward.1} parent=27 // pred_check_branch
          %267 = sbr.rel (%p265) target = $region32
        $region31: #{_vq_forward.1} parent=27 // pred_region
          %p268 = scmp.lt.s32.totalorder %s18, 1
          %s269 = scalar_select %p268, %s18, 1
          %s270 = smul.addr %s269, 8
          %s271 = scalar_lea.vmem %s0, %s270
        $region32: #{_vq_forward.1} parent=27 // pred_fallthru
          _
        // Predicated region
        $region33: #{_vq_forward.1} parent=27 // pred_check
          %p272 = pneg %p127
        $region34: #{_vq_forward.1} parent=27 // pred_check_branch
          %274 = sbr.rel (%p272) target = $region36
        $region35: #{_vq_forward.1} parent=27 // pred_region
          %p275 = scmp.lt.s32.totalorder %s18, 1
          %s276 = scalar_select %p275, %s18, 1
          %s277 = smul.addr %s276, 8
          %s278 = scalar_lea.vmem %s4, %s277
        $region36: #{_vq_forward.1} parent=27 // pred_fallthru
          _
      $region28: #{_vq_forward.1} parent=5 // pred_fallthru
        _
      %p279 = scmp.le.s32.totalorder 1, %s18
      %p280 = scmp.lt.s32.totalorder %s18, 3
      %p281 = pnand %p279, %p280
      %p282 = pneg %p281
      // Predicated region
      $region37: #{_vq_forward.1} parent=5 // pred_check
        _
      $region38: #{_vq_forward.1} parent=5 // pred_check_branch
        %284 = sbr.rel (%p281) target = $region40
      $region39: #{_vq_forward.1} parent=5 // pred_region
        %s285 = ssub.s32 %s18, 1
        %p286 = scmp.lt.s32.totalorder %s23, 1
        %s287 = scalar_select %p286, %s23, 1
        %s288 = smul.addr %s287, 8
        %s289 = scalar_lea.vmem %s0, %s288
        %p290 = pneg %p44
        %p291 = pneg %p41
        %p292 = pneg %p65
        %p293 = pneg %p62
        %p294 = pneg %p86
        %p295 = pneg %p83
        %p296 = pneg %p107
        %p297 = pneg %p104
        %p298 = scmp.lt.s32.totalorder %s23, 1
        %s299 = scalar_select %p298, %s23, 1
        %s300 = smul.addr %s299, 8
        %s301 = scalar_lea.vmem %s4, %s300
        %p302 = pneg %p133
        %p303 = pneg %p130
        %p304 = pneg %p159
        %p305 = pneg %p156
        %s306 = sand.u32 %s146, 1
        %s307 = scalar_lea.sflag [#allocation3], %s306
        %s308 = sand.u32 %s146, 1
        %s309 = smul.addr %s308, 8
        %s310 = scalar_lea.vmem [#allocation2], %s309
        %p311 = pneg %p185
        %p312 = pneg %p182
        %p313 = scmp.lt.s32.totalorder %s23, 1
        %s314 = scalar_select %p313, %s23, 1
        %s315 = scalar_lea.vmem %s6, %s314
        %p316 = pneg %p211
        %p317 = pneg %p208
        %p318 = scmp.lt.s32.totalorder %s23, 1
        %s319 = scalar_select %p318, %s23, 1
        %s320 = scalar_lea.vmem %s7, %s319
        %p321 = pneg %p237
        %p322 = pneg %p234
        %p323 = scmp.lt.s32.totalorder %s23, 1
        %s324 = scalar_select %p323, %s23, 1
        %s325 = scalar_lea.vmem %s8, %s324
        %p326 = scmp.lt.s32.totalorder %s23, 1
        %s327 = scalar_select %p326, %s23, 1
        %s328 = smul.addr %s327, 8
        %s329 = scalar_lea.vmem %s0, %s328
        %p330 = scmp.lt.s32.totalorder %s23, 1
        %s331 = scalar_select %p330, %s23, 1
        %s332 = smul.addr %s331, 8
        %s333 = scalar_lea.vmem %s4, %s332
        %p334 = scmp.lt.s32.totalorder %s23, 1
        %s335 = scalar_select %p334, %s23, 1
        %s336 = scalar_lea.vmem %s6, %s335
        %p337 = scmp.lt.s32.totalorder %s23, 1
        %s338 = scalar_select %p337, %s23, 1
        %s339 = scalar_lea.vmem %s7, %s338
        %p340 = scmp.lt.s32.totalorder %s23, 1
        %s341 = scalar_select %p340, %s23, 1
        %s342 = scalar_lea.vmem %s8, %s341
        %v344 = vld [vmem:[%s329] sm:$0xff]
        %v345 = vpack.c.bf16 %v344, %v344
        %v346 = vld [vmem:[%s2] sm:$0xf]
        %v347 = vld [vmem:[%s2 + $0x4] sm:$0xf]
        %v350 = vunpack.c.l.b16 %v346
        %v351 = vunpack.c.l.b16 %v347
        %v352 = vpack.c.b16 %v351, %v350
        %vm353 = vcmask 261120
        %v355 = vsel %vm353, %v345, 0
        %v358 = vsel %vm353, %v352, 0
        %360 = vmatprep.subr.bf16.mxu0 0
        %361 = vmatpush1.bf16.xpose.msra.mxu0 0
        %362 = vmatprep.subr.bf16.mxu0 0
        %363 = vmatpush1.bf16.xpose.msra.mxu0 0
        %364 = vmatprep.subr.bf16.mxu0 0
        %365 = vmatpush1.bf16.xpose.msra.mxu0 0
        %366 = vmatprep.subr.bf16.mxu0 0
        %367 = vmatpush1.bf16.xpose.msra.mxu0 0
        %368 = vmatprep.subr.bf16.mxu0 0
        %369 = vmatpush1.bf16.xpose.msra.mxu0 0
        %370 = vmatprep.subr.bf16.mxu0 0
        %371 = vmatpush1.bf16.xpose.msra.mxu0 0
        %372 = vmatprep.subr.bf16.mxu0 0
        %373 = vmatpush1.bf16.xpose.msra.mxu0 0
        %374 = vmatprep.subr.bf16.mxu0 0
        %375 = vmatpush1.bf16.xpose.msra.mxu0 %v358
        %376 = vmatprep.subr.bf16.mxu0 0
        %377 = vmatpush2.bf16.xpose.msra.mxu0 0
        %378 = vmatprep.subr.bf16.mxu0 0
        %379 = vmatpush2.bf16.xpose.msra.mxu0 0
        %380 = vmatprep.subr.bf16.mxu0 0
        %381 = vmatpush2.bf16.xpose.msra.mxu0 0
        %382 = vmatprep.subr.bf16.mxu0 0
        %383 = vmatpush2.bf16.xpose.msra.mxu0 0
        %384 = vmatprep.subr.bf16.mxu0 0
        %385 = vmatpush2.bf16.xpose.msra.mxu0 0
        %386 = vmatprep.subr.bf16.mxu0 0
        %387 = vmatpush2.bf16.xpose.msra.mxu0 0
        %388 = vmatprep.subr.bf16.mxu0 0
        %389 = vmatpush2.bf16.xpose.msra.mxu0 0
        %390 = vmatprep.subr.bf16.mxu0 0
        %391 = vmatpush2.bf16.xpose.msra.mxu0 0
        %392 = vmatprep.mubr.bf16.mxu0 0
        %393 = vmatmul.mubr.bf16.gmra.mxu0 %v355
        %v394 = vpop.f32.mrf.mxu0
        %v395 = vadd.f32 0.0, %v394
        %v396 = vpop.f32.mrf.mxu0
        %v397 = vpop.f32.mrf.mxu0
        %v398 = vpop.f32.mrf.mxu0
        %399 = vdwg.mxu0
        %v400 = vld [vmem:[%s3] sm:$0x1]
        %v402 = vlaneseq
        %v403 = vshrl.u32 %v402, 7
        %v404 = vsub.s32 0, %v403
        %v405 = vrot.slane %v400, %v404
        %v407 = vsub.f32 %v395, %v405
        %v408 = vld [vmem:[%s333] sm:$0xff]
        %v409 = vadd.f32 %v407, %v408
        %vm410 = vcmask 130048
        %v411 = vsel %vm410, %v409, -inf
        %412 = vmax.xlane.f32.xlu0 %v411
        %v413 = vpop.xlane.xlu0 %412
        %v414 = vsub.f32 %v409, %v413
        %v415 = vmul.f32 %v414, 1.442695
        %v416 = vpow.pop %v415
        %v417 = vsel %vm410, %v416, 0.0
        %418 = vadd.xlane.f32.xlu0 %v417
        %v419 = vpop.xlane.xlu0 %418
        %v420 = vlog2.pop %v419
        %v421 = vmul.f32 %v420, 0.6931472
        %v422 = vsub.f32 %v414, %v421
        %v423 = vrcp.pop %v419
        %v424 = vmul.f32 %v416, %v423
        %v425 = vlaneseq
        %v426 = vand.u32 %v425, 127
        %vm427 = vcmp.eq.f32.partialorder %v409, %v413
        %v428 = vsel %vm427, %v426, 16
        %v429 = vsel %vm410, %v428, 2147483647
        %v430 = vand.u32 %v429, 65535
        %v431 = vshra.s32 %v429, 16
        %v432 = vcvt.s32.f32 %v430
        %v433 = vcvt.s32.f32 %v431
        %434 = vmin.xlane.f32.xlu0 %v433
        %v435 = vpop.xlane.xlu0 %434
        %vm436 = vcmp.eq.f32.partialorder %v433, %v435
        %v437 = vsel %vm436, %v432, inf
        %438 = vmin.xlane.f32.xlu0 %v437
        %v439 = vpop.xlane.xlu0 %438
        %v440 = vcvt.f32.s32 %v439
        %v441 = vcvt.f32.s32 %v435
        %v442 = vshll.u32 %v441, 16
        %v443 = vadd.s32 %v442, %v440
        %vm444 = vcmp.eq.s32.totalorder %v426, %v443
        %v445 = vsel %vm444, 1, 0
        %v446 = vcvt.s32.f32 %v445
        %v447 = vld [vmem:[%s1] sm:$0xff]
        %v448 = vld [vmem:[%s1 + $0x8] sm:$0xff]
        %v450 = vsel %vm410, %v446, 0
        %452 = vmatprep.subr.mxu0 0.0
        %453 = vmatpush1.msra.mxu0 0.0
        %454 = vmatprep.subr.mxu0 0.0
        %455 = vmatpush1.msra.mxu0 0.0
        %456 = vmatprep.subr.mxu0 0.0
        %457 = vmatpush1.msra.mxu0 0.0
        %458 = vmatprep.subr.mxu0 0.0
        %459 = vmatpush1.msra.mxu0 0.0
        %460 = vmatprep.subr.mxu0 0.0
        %461 = vmatpush1.msra.mxu0 0.0
        %462 = vmatprep.subr.mxu0 0.0
        %463 = vmatpush1.msra.mxu0 0.0
        %464 = vmatprep.subr.mxu0 0.0
        %465 = vmatpush1.msra.mxu0 0.0
        %466 = vmatprep.subr.mxu0 0.0
        %467 = vmatpush1.msra.mxu0 0.0
        %468 = vmatprep.subr.mxu0 0.0
        %469 = vmatpush1.msra.mxu0 0.0
        %470 = vmatprep.subr.mxu0 0.0
        %471 = vmatpush1.msra.mxu0 0.0
        %472 = vmatprep.subr.mxu0 0.0
        %473 = vmatpush1.msra.mxu0 0.0
        %474 = vmatprep.subr.mxu0 0.0
        %475 = vmatpush1.msra.mxu0 0.0
        %476 = vmatprep.subr.mxu0 0.0
        %477 = vmatpush1.msra.mxu0 0.0
        %478 = vmatprep.subr.mxu0 0.0
        %479 = vmatpush1.msra.mxu0 0.0
        %480 = vmatprep.subr.mxu0 0.0
        %481 = vmatpush1.msra.mxu0 %v448
        %482 = vmatprep.subr.mxu0 0.0
        %483 = vmatpush1.msra.mxu0 %v447
        %484 = vmatprep.subr.mxu0 0.0
        %485 = vmatpush2.msra.mxu0 0.0
        %486 = vmatprep.subr.mxu0 0.0
        %487 = vmatpush2.msra.mxu0 0.0
        %488 = vmatprep.subr.mxu0 0.0
        %489 = vmatpush2.msra.mxu0 0.0
        %490 = vmatprep.subr.mxu0 0.0
        %491 = vmatpush2.msra.mxu0 0.0
        %492 = vmatprep.subr.mxu0 0.0
        %493 = vmatpush2.msra.mxu0 0.0
        %494 = vmatprep.subr.mxu0 0.0
        %495 = vmatpush2.msra.mxu0 0.0
        %496 = vmatprep.subr.mxu0 0.0
        %497 = vmatpush2.msra.mxu0 0.0
        %498 = vmatprep.subr.mxu0 0.0
        %499 = vmatpush2.msra.mxu0 0.0
        %500 = vmatprep.subr.mxu0 0.0
        %501 = vmatpush2.msra.mxu0 0.0
        %502 = vmatprep.subr.mxu0 0.0
        %503 = vmatpush2.msra.mxu0 0.0
        %504 = vmatprep.subr.mxu0 0.0
        %505 = vmatpush2.msra.mxu0 0.0
        %506 = vmatprep.subr.mxu0 0.0
        %507 = vmatpush2.msra.mxu0 0.0
        %508 = vmatprep.subr.mxu0 0.0
        %509 = vmatpush2.msra.mxu0 0.0
        %510 = vmatprep.subr.mxu0 0.0
        %511 = vmatpush2.msra.mxu0 0.0
        %512 = vmatprep.subr.mxu0 0.0
        %513 = vmatpush2.msra.mxu0 0.0
        %514 = vmatprep.subr.mxu0 0.0
        %515 = vmatpush2.msra.mxu0 0.0
        %516 = vmatprep.mubr.f32.mxu0 0.0
        %517 = vmatmul.mubr.f32.gmra.mxu0 %v450
        %v518 = vpop.f32.mrf.mxu0
        %v519 = vadd.f32 0.0, %v518
        %v520 = vpop.f32.mrf.mxu0
        %521 = vdwg.mxu0
        %522 = vst.msk [vmem:[%s310] sm:$0xff] %vm353, %v519
        %v523 = vsel %vm410, %v424, 0.0
        %v524 = vrot.slane %v523, 4
        %v525 = vadd.f32 %v523, %v524
        %v526 = vrot.slane %v525, 2
        %v527 = vadd.f32 %v525, %v526
        %v528 = vrot.slane %v527, 1
        %v529 = vadd.f32 %v527, %v528
        %vm530 = vcmask 122880
        %531 = vst.msk [vmem:[%s336] sm:$0x1] %vm530, %v529
        %v532 = vsel %vm410, %v422, 0.0
        %v533 = vrot.slane %v532, 4
        %v534 = vadd.f32 %v532, %v533
        %v535 = vrot.slane %v534, 2
        %v536 = vadd.f32 %v534, %v535
        %v537 = vrot.slane %v536, 1
        %v538 = vadd.f32 %v536, %v537
        %539 = vst.msk [vmem:[%s339] sm:$0x1] %vm530, %v538
        %v540 = vsub.f32 %v519, %v344
        %v541 = vmul.f32 %v540, %v540
        %v542 = vsel %vm353, %v541, 0.0
        %543 = vadd.xlane.f32.xlu0 %v542
        %v544 = vpop.xlane.xlu0 %543
        %v545 = vrot.slane %v544, 4
        %v546 = vadd.f32 %v544, %v545
        %v547 = vrot.slane %v546, 2
        %v548 = vadd.f32 %v546, %v547
        %v549 = vrot.slane %v548, 1
        %v550 = vadd.f32 %v548, %v549
        %vm551 = vcmask 0
        %552 = vst.msk [vmem:[%s342] sm:$0x1] %vm551, %v550
        %s553 = sand.u32 %s146, 1
        %s554 = scalar_lea.sflag [#allocation3], %s553
        %s555 = sand.u32 %s146, 1
        %s556 = smul.addr %s555, 8
        %s557 = scalar_lea.vmem [#allocation2], %s556
        %p558 = scmp.lt.s32.totalorder %s23, 1
        %s559 = scalar_select %p558, %s23, 1
        %s560 = scalar_lea.vmem %s6, %s559
        %p561 = scmp.lt.s32.totalorder %s23, 1
        %s562 = scalar_select %p561, %s23, 1
        %s563 = scalar_lea.vmem %s7, %s562
        %p564 = scmp.lt.s32.totalorder %s23, 1
        %s565 = scalar_select %p564, %s23, 1
        %s566 = scalar_lea.vmem %s8, %s565
        // Predicated region
        $region41: #{_vq_forward.1} parent=39 // pred_check
          %p567 = pneg %p156
        $region42: #{_vq_forward.1} parent=39 // pred_check_branch
          %569 = sbr.rel (%p567) target = $region44
        $region43: #{_vq_forward.1} parent=39 // pred_region
          %s571 = ssub.s32 128, 128
          %572 = vsyncadd %s554, %s571
          %s573 = smul.addr %s23, 128
          %s574 = scalar_lea.hbm %s5, %s573
          %s576 = sshll.u32 %s557, 4
          %s577 = int_to_ptr.vmem [resolvable:$true] %s576
          %579 = dma.vmem_to_hbm [thread:$0]  %s577, 128, %s574, %s554
        $region44: #{_vq_forward.1} parent=39 // pred_fallthru
          _
        // Predicated region
        $region45: #{_vq_forward.1} parent=39 // pred_check
          %p580 = pneg %p182
        $region46: #{_vq_forward.1} parent=39 // pred_check_branch
          %582 = sbr.rel (%p580) target = $region48
        $region47: #{_vq_forward.1} parent=39 // pred_region
          _
        $region48: #{_vq_forward.1} parent=39 // pred_fallthru
          _
        // Predicated region
        $region49: #{_vq_forward.1} parent=39 // pred_check
          %p583 = pneg %p208
        $region50: #{_vq_forward.1} parent=39 // pred_check_branch
          %585 = sbr.rel (%p583) target = $region52
        $region51: #{_vq_forward.1} parent=39 // pred_region
          _
        $region52: #{_vq_forward.1} parent=39 // pred_fallthru
          _
        // Predicated region
        $region53: #{_vq_forward.1} parent=39 // pred_check
          %p586 = pneg %p234
        $region54: #{_vq_forward.1} parent=39 // pred_check_branch
          %588 = sbr.rel (%p586) target = $region56
        $region55: #{_vq_forward.1} parent=39 // pred_region
          _
        $region56: #{_vq_forward.1} parent=39 // pred_fallthru
          _
      $region40: #{_vq_forward.1} parent=5 // pred_fallthru
        _
      %p589 = scmp.le.s32.totalorder 2, %s18
      // Predicated region
      $region57: #{_vq_forward.1} parent=5 // pred_check
        %p590 = pneg %p589
      $region58: #{_vq_forward.1} parent=5 // pred_check_branch
        %592 = sbr.rel (%p590) target = $region60
      $region59: #{_vq_forward.1} parent=5 // pred_region
        %s593 = ssub.s32 %s18, 2
        // Predicated region
        $region61: #{_vq_forward.1} parent=59 // pred_check
          %p594 = pneg %p162
        $region62: #{_vq_forward.1} parent=59 // pred_check_branch
          %596 = sbr.rel (%p594) target = $region64
        $region63: #{_vq_forward.1} parent=59 // pred_region
          %s597 = sand.u32 %s147, 1
          %s598 = scalar_lea.sflag [#allocation3], %s597
          %s599 = sand.u32 %s147, 1
          %s600 = smul.addr %s599, 8
          %s601 = scalar_lea.vmem [#allocation2], %s600
          %602 = dma.done %s598, 128
        $region64: #{_vq_forward.1} parent=59 // pred_fallthru
          _
        // Predicated region
        $region65: #{_vq_forward.1} parent=59 // pred_check
          %p603 = pneg %p188
        $region66: #{_vq_forward.1} parent=59 // pred_check_branch
          %605 = sbr.rel (%p603) target = $region68
        $region67: #{_vq_forward.1} parent=59 // pred_region
          %p606 = scmp.lt.s32.totalorder %s24, 1
          %s607 = scalar_select %p606, %s24, 1
          %s608 = scalar_lea.vmem %s6, %s607
        $region68: #{_vq_forward.1} parent=59 // pred_fallthru
          _
        // Predicated region
        $region69: #{_vq_forward.1} parent=59 // pred_check
          %p609 = pneg %p214
        $region70: #{_vq_forward.1} parent=59 // pred_check_branch
          %611 = sbr.rel (%p609) target = $region72
        $region71: #{_vq_forward.1} parent=59 // pred_region
          %p612 = scmp.lt.s32.totalorder %s24, 1
          %s613 = scalar_select %p612, %s24, 1
          %s614 = scalar_lea.vmem %s7, %s613
        $region72: #{_vq_forward.1} parent=59 // pred_fallthru
          _
        // Predicated region
        $region73: #{_vq_forward.1} parent=59 // pred_check
          %p615 = pneg %p240
        $region74: #{_vq_forward.1} parent=59 // pred_check_branch
          %617 = sbr.rel (%p615) target = $region76
        $region75: #{_vq_forward.1} parent=59 // pred_region
          %p618 = scmp.lt.s32.totalorder %s24, 1
          %s619 = scalar_select %p618, %s24, 1
          %s620 = scalar_lea.vmem %s8, %s619
        $region76: #{_vq_forward.1} parent=59 // pred_fallthru
          _
      $region60: #{_vq_forward.1} parent=5 // pred_fallthru
        _
    $region6: #{_vq_forward.1} parent=1 // loop_footer
      %s22 = sadd.s32 1, %s18
    $region7: #{_vq_forward.1} parent=1 // loop_footer_branch
      %17 = sbr.rel target = $region3
    $region8: #{_vq_forward.1} parent=1 // loop_exit
      _
    %621 = vsyncpa [#allocation3], 1
    %s622 = scalar_lea.sflag [#allocation3], 1
    %623 = vsyncpa %s622, 1

</llo_original>
